<compile_context>
chip_gen: v6e
topology: v6e:2x2x1
jax: 0.10.0
libtpu: 0.0.40
codegen_flags: <defaults>
</compile_context>

<pallas_src>
import functools

import jax
import jax.numpy as jnp
from jax.experimental import pallas as pl
from jax.experimental.pallas import tpu as pltpu


def _encoder_kernel(x_ref, w1_ref, b1_ref, w2_ref, b2_ref, g_ref, be_ref,
                    o_ref, x_sc, xbf_sc, acc_sc, *, nf, nl):
    """One grid step = (row tile m, layer l, Dff chunk f); f is fastest."""
    l = pl.program_id(1)          # layer index
    f = pl.program_id(2)          # Dff chunk index

    # Load this row tile into the resident activation scratches once per m:
    # f32 copy for residual/LayerNorm, cached bf16 copy for the MXU.
    @pl.when((l == 0) & (f == 0))
    def _():
        xf = x_ref[...].astype(jnp.float32)
        x_sc[...] = xf
        xbf_sc[...] = xf.astype(jnp.bfloat16)

    # FFN on one tff-wide chunk of hidden units (exact: GELU is elementwise).
    h = jnp.dot(xbf_sc[...], w1_ref[0], preferred_element_type=jnp.float32)
    h = jax.nn.gelu(h + b1_ref[0], approximate=True)              # (tm, tff) f32
    z = jnp.dot(h.astype(jnp.bfloat16), w2_ref[0],
                preferred_element_type=jnp.float32)               # (tm, D) f32

    def _epilogue(z_full):
        # bias + residual + LayerNorm (centered variance), all f32.
        y = z_full + b2_ref[0] + x_sc[...]
        mu = jnp.mean(y, axis=-1, keepdims=True)
        yc = y - mu
        var = jnp.mean(yc * yc, axis=-1, keepdims=True)
        out = yc * jax.lax.rsqrt(var + 1e-5) * g_ref[0] + be_ref[0]
        x_sc[...] = out
        xbf_sc[...] = out.astype(jnp.bfloat16)   # bf16 cast once per layer

        @pl.when(l == nl - 1)
        def _():
            o_ref[...] = out.astype(o_ref.dtype)

    if nf == 1:
        # Dff fits in one chunk: no accumulator scratch, no RMW traffic.
        _epilogue(z)
    else:
        @pl.when(f == 0)
        def _():
            acc_sc[...] = z          # set-on-first-chunk (no zero-init pass)

        @pl.when(f > 0)
        def _():
            acc_sc[...] += z

        @pl.when(f == nf - 1)
        def _():
            _epilogue(acc_sc[...])


def _vmem_capacity_bytes():
    """Physical VMEM of this chip; conservative 64 MiB (v7x per-TC) fallback."""
    try:
        cap = getattr(pltpu.get_tpu_info(), "vmem_capacity_bytes", None)
        if cap:
            return int(cap)
    except Exception:
        pass
    return 64 * 1024 * 1024


def _choose_tile(total, target, align):
    """Largest multiple of `align` that divides `total` and is <= target;
    falls back to `total` itself (full-extent block is always legal)."""
    t = min(int(target), int(total))
    if t == total:
        return total
    t = (t // align) * align
    while t >= align:
        if total % t == 0:
            return t
        t -= align
    return total


def _vmem_estimate(tm, tff, d, nf, wbuf):
    est = 2 * tm * d * 4                 # x row tile, double-buffered (f32)
    est += 2 * tm * d * 4                # output row tile, double-buffered
    est += wbuf * d * tff * 2            # w1 chunk buffers (bf16)
    est += wbuf * tff * d * 2            # w2 chunk buffers (bf16)
    est += 2 * (tff * 4 + 3 * d * 4)     # b1 / b2 / gamma / beta buffers
    est += tm * d * 4                    # x_sc  (resident f32 activations)
    est += tm * d * 2                    # xbf_sc (cached bf16 activations)
    est += (tm * d * 4) if nf > 1 else 8 * 128 * 4   # acc_sc
    est += tm * tff * 4                  # live hidden chunk h
    return est


def encoder_forward(x, params, *, tm=None, tff=None, weight_buffers=2):
    """Encoder.forward: all duplicated FTP modules fused into one pallas_call.

    x: (B, L, D) float32
    params: stacked per-layer weights:
        w1 (NL, D, Dff) bf16, b1 (NL, 1, Dff) f32,
        w2 (NL, Dff, D) bf16, b2/gamma/beta (NL, 1, D) f32
    """
    B, L, D = x.shape
    M = B * L
    NL, _, Dff = params["w1"].shape

    if D % 128 != 0:
        # TODO(synk): pad D to a multiple of 128 instead of raising; a
        # non-128 D forces masked partial stores on every epilogue/output.
        raise ValueError(f"model dim D={D} must be a multiple of 128")

    vmem_cap = _vmem_capacity_bytes()
    budget = int(vmem_cap * 0.80)        # headroom for Mosaic internals

    # ---- row tile: keep streamed-weight arithmetic intensity (~tm F/B) high.
    target_tm = 1024 if vmem_cap > (96 << 20) else 512
    tm_sel = _choose_tile(M, tm if tm is not None else target_tm, 8)
    # On 2-TC chips (v7x, 64 MiB VMEM) keep >= 2 blocks on the parallel row
    # axis so the second TensorCore is not idle.
    if vmem_cap <= (96 << 20) and M // tm_sel < 2 and M >= 16:
        tm_sel = _choose_tile(M, max(M // 2, 8), 8)

    # ---- Dff chunk: as large as the budget allows (ideally all of Dff).
    tff_sel = _choose_tile(Dff, tff if tff is not None else Dff, 128)

    wbuf = max(2, int(weight_buffers))

    def est_fn(tm_, tff_):
        return _vmem_estimate(tm_, tff_, D, Dff // tff_, wbuf)

    while est_fn(tm_sel, tff_sel) > budget:
        if tff_sel > 256:
            new_tff = _choose_tile(Dff, max(tff_sel // 2, 256), 128)
            if new_tff < tff_sel:
                tff_sel = new_tff
                continue
        if tm_sel > 8:
            new_tm = _choose_tile(M, max(tm_sel // 2, 8), 8)
            if new_tm < tm_sel:
                tm_sel = new_tm
                continue
        break   # cannot shrink further; let the compiler try

    nf = Dff // tff_sel
    grid = (M // tm_sel, NL, nf)

    # Weights are the only per-step streamed operands; optional deeper
    # buffering hides DMA jitter at layer / ff-chunk boundaries.
    w_kw = {}
    if weight_buffers > 2:
        w_kw = dict(pipeline_mode=pl.Buffered(weight_buffers))
    w1_spec = pl.BlockSpec((1, D, tff_sel), lambda m, l, f: (l, 0, f), **w_kw)
    w2_spec = pl.BlockSpec((1, tff_sel, D), lambda m, l, f: (l, f, 0), **w_kw)

    acc_shape = (tm_sel, D) if nf > 1 else (8, 128)   # acc unused when nf == 1

    grid_spec = pltpu.PrefetchScalarGridSpec(
        num_scalar_prefetch=0,
        grid=grid,
        in_specs=[
            pl.BlockSpec((tm_sel, D), lambda m, l, f: (m, 0)),         # x rows
            w1_spec,                                                   # w1 chunk
            pl.BlockSpec((1, 1, tff_sel), lambda m, l, f: (l, 0, f)),  # b1 chunk
            w2_spec,                                                   # w2 chunk
            pl.BlockSpec((1, 1, D), lambda m, l, f: (l, 0, 0)),        # b2
            pl.BlockSpec((1, 1, D), lambda m, l, f: (l, 0, 0)),        # gamma
            pl.BlockSpec((1, 1, D), lambda m, l, f: (l, 0, 0)),        # beta
        ],
        out_specs=pl.BlockSpec((tm_sel, D), lambda m, l, f: (m, 0)),
        scratch_shapes=[
            pltpu.VMEM((tm_sel, D), jnp.float32),    # x_sc: resident f32 acts
            pltpu.VMEM((tm_sel, D), jnp.bfloat16),   # xbf_sc: cached bf16 acts
            pltpu.VMEM(acc_shape, jnp.float32),      # acc_sc (only if nf > 1)
        ],
    )

    est = est_fn(tm_sel, tff_sel)
    # Always set the scoped-VMEM limit (default is only 16 MiB on v5e,
    # 32 MiB on v6e/v7x); clamp under this chip's physical capacity.
    vmem_limit = min(max(int(est * 1.25), 4 << 20), int(vmem_cap * 0.85))

    kernel = functools.partial(_encoder_kernel, nf=nf, nl=NL)

    out = pl.pallas_call(
        kernel,
        out_shape=jax.ShapeDtypeStruct((M, D), x.dtype),
        grid_spec=grid_spec,
        compiler_params=pltpu.CompilerParams(
            dimension_semantics=("parallel", "arbitrary", "arbitrary"),
            vmem_limit_bytes=vmem_limit),
    )(x.reshape(M, D), params["w1"], params["b1"], params["w2"],
      params["b2"], params["gamma"], params["beta"])

    return out.reshape(B, L, D)


def make_stacked_params(key, d_model, d_ff, num_layers):
    k1, k2 = jax.random.split(key)
    w1 = (jax.random.normal(k1, (num_layers, d_model, d_ff), jnp.float32)
          * (1.0 / jnp.sqrt(d_model)))
    w2 = (jax.random.normal(k2, (num_layers, d_ff, d_model), jnp.float32)
          * (1.0 / jnp.sqrt(d_ff)))
    return {
        "w1": w1.astype(jnp.bfloat16),
        "b1": jnp.zeros((num_layers, 1, d_ff), jnp.float32),
        "w2": w2.astype(jnp.bfloat16),
        "b2": jnp.zeros((num_layers, 1, d_model), jnp.float32),
        "gamma": jnp.ones((num_layers, 1, d_model), jnp.float32),
        "beta": jnp.zeros((num_layers, 1, d_model), jnp.float32),
    }


def encoder_reference(x, params):
    """Pure-JAX reference with the same bf16-matmul / f32-LayerNorm policy."""
    B, L, D = x.shape
    y = x.reshape(B * L, D).astype(jnp.float32)
    for l in range(params["w1"].shape[0]):
        h = jnp.dot(y.astype(jnp.bfloat16), params["w1"][l],
                    preferred_element_type=jnp.float32)
        h = jax.nn.gelu(h + params["b1"][l], approximate=True)
        z = jnp.dot(h.astype(jnp.bfloat16), params["w2"][l],
                    preferred_element_type=jnp.float32)
        z = z + params["b2"][l] + y
        mu = jnp.mean(z, axis=-1, keepdims=True)
        zc = z - mu
        var = jnp.mean(zc * zc, axis=-1, keepdims=True)
        y = zc * jax.lax.rsqrt(var + 1e-5)
        y = y * params["gamma"][l] + params["beta"][l]
    return y.reshape(B, L, D)


if __name__ == "__main__":
    k1, k2, k3, k4 = jax.random.split(jax.random.PRNGKey(0), 4)

    # --- config 1: Dff fits a single chunk (nf == 1, no accumulator) -------
    B, L, D, DFF, NLAYERS = 2, 8, 128, 256, 2
    x = jax.random.normal(k1, (B, L, D), jnp.float32)
    params = make_stacked_params(k2, D, DFF, NLAYERS)

    fwd = jax.jit(functools.partial(encoder_forward, params=params))
    out = fwd(x)
    jax.block_until_ready(out)

    assert out.shape == (B, L, D), out.shape
    assert out.dtype == jnp.float32
    assert bool(jnp.isfinite(out).all())
    ref = encoder_reference(x, params)
    err1 = float(jnp.max(jnp.abs(out - ref)))
    assert err1 < 5e-2, f"config1 max abs err {err1}"

    # --- config 2: forced small tiles -> multi-chunk Dff accumulator path --
    B2, L2, D2, DFF2, NL2 = 2, 16, 128, 512, 2
    x2 = jax.random.normal(k3, (B2, L2, D2), jnp.float32)
    params2 = make_stacked_params(k4, D2, DFF2, NL2)

    fwd2 = jax.jit(functools.partial(encoder_forward, params=params2,
                                     tm=8, tff=128))
    out2 = fwd2(x2)
    jax.block_until_ready(out2)

    assert out2.shape == (B2, L2, D2)
    assert bool(jnp.isfinite(out2).all())
    ref2 = encoder_reference(x2, params2)
    err2 = float(jnp.max(jnp.abs(out2 - ref2)))
    assert err2 < 5e-2, f"config2 max abs err {err2}"

    print("KERNEL_OK")
</pallas_src>

<mosaic_0001>
module attributes {stable_mosaic.version = 11 : i64} {
  func.func @_encoder_kernel(%arg0: i32, %arg1: i32, %arg2: i32, %arg3: memref<8x128xf32, #tpu.memory_space<vmem>>, %arg4: memref<1x128x256xbf16, #tpu.memory_space<vmem>>, %arg5: memref<1x1x256xf32, #tpu.memory_space<vmem>>, %arg6: memref<1x256x128xbf16, #tpu.memory_space<vmem>>, %arg7: memref<1x1x128xf32, #tpu.memory_space<vmem>>, %arg8: memref<1x1x128xf32, #tpu.memory_space<vmem>>, %arg9: memref<1x1x128xf32, #tpu.memory_space<vmem>>, %arg10: memref<8x128xf32, #tpu.memory_space<vmem>>, %arg11: memref<8x128xf32, #tpu.memory_space<vmem>>, %arg12: memref<8x128xbf16, #tpu.memory_space<vmem>>, %arg13: memref<8x128xf32, #tpu.memory_space<vmem>>) attributes {dimension_semantics = [#tpu.dimension_semantics<parallel>, #tpu.dimension_semantics<arbitrary>, #tpu.dimension_semantics<arbitrary>], iteration_bounds = array<i64: 2, 2, 1>, scalar_prefetch = 0 : i64, scratch_operands = 3 : i64, tpu.core_type = #tpu.core_type<tc>, window_params = [{transform_indices = @transform_0, window_bounds = array<i64: 8, 128>}, {transform_indices = @transform_1, window_bounds = array<i64: 1, 128, 256>}, {transform_indices = @transform_2, window_bounds = array<i64: 1, 1, 256>}, {transform_indices = @transform_3, window_bounds = array<i64: 1, 256, 128>}, {transform_indices = @transform_4, window_bounds = array<i64: 1, 1, 128>}, {transform_indices = @transform_5, window_bounds = array<i64: 1, 1, 128>}, {transform_indices = @transform_6, window_bounds = array<i64: 1, 1, 128>}, {transform_indices = @transform_7, window_bounds = array<i64: 8, 128>}]} {
    %c0_i32 = arith.constant 0 : i32
    %0 = arith.cmpi eq, %arg1, %c0_i32 : i32
    %c0_i32_0 = arith.constant 0 : i32
    %1 = arith.cmpi eq, %arg2, %c0_i32_0 : i32
    %2 = arith.andi %0, %1 : i1
    %3 = arith.extui %2 : i1 to i32
    %c0_i32_1 = arith.constant 0 : i32
    %4 = arith.cmpi ne, %3, %c0_i32_1 : i32
    scf.if %4 {
      %c0_38 = arith.constant 0 : index
      %c0_39 = arith.constant 0 : index
      %66 = vector.load %arg3[%c0_38, %c0_39] : memref<8x128xf32, #tpu.memory_space<vmem>>, vector<8x128xf32>
      %c0_40 = arith.constant 0 : index
      %c0_41 = arith.constant 0 : index
      %67 = vector.load %arg11[%c0_40, %c0_41] : memref<8x128xf32, #tpu.memory_space<vmem>>, vector<8x128xf32>
      tpu.vector_store %arg11[%c0_40, %c0_41], %66 {strides = array<i32>} : memref<8x128xf32, #tpu.memory_space<vmem>>, vector<8x128xf32>,
      %68 = arith.truncf %66 : vector<8x128xf32> to vector<8x128xbf16>
      %c0_42 = arith.constant 0 : index
      %c0_43 = arith.constant 0 : index
      %69 = vector.load %arg12[%c0_42, %c0_43] : memref<8x128xbf16, #tpu.memory_space<vmem>>, vector<8x128xbf16>
      tpu.vector_store %arg12[%c0_42, %c0_43], %68 {strides = array<i32>} : memref<8x128xbf16, #tpu.memory_space<vmem>>, vector<8x128xbf16>,
    } else {
    }
    %c0 = arith.constant 0 : index
    %c0_2 = arith.constant 0 : index
    %5 = vector.load %arg12[%c0, %c0_2] : memref<8x128xbf16, #tpu.memory_space<vmem>>, vector<8x128xbf16>
    %c0_3 = arith.constant 0 : index
    %c0_4 = arith.constant 0 : index
    %c0_5 = arith.constant 0 : index
    %6 = vector.load %arg4[%c0_3, %c0_4, %c0_5] : memref<1x128x256xbf16, #tpu.memory_space<vmem>>, vector<1x128x256xbf16>
    %7 = vector.shape_cast %6 : vector<1x128x256xbf16> to vector<128x256xbf16>
    %cst = arith.constant dense<0.000000e+00> : vector<8x256xf32>
    %8 = tpu.matmul %5, %7, %cst {dimension_numbers = #tpu.dot_dimension_numbers<[1], [0], [0], [1], [0, 0, 1, 1], [], []>} : vector<8x128xbf16>, vector<128x256xbf16>, vector<8x256xf32> -> vector<8x256xf32>
    %c0_6 = arith.constant 0 : index
    %c0_7 = arith.constant 0 : index
    %c0_8 = arith.constant 0 : index
    %9 = vector.load %arg5[%c0_6, %c0_7, %c0_8] : memref<1x1x256xf32, #tpu.memory_space<vmem>>, vector<1x1x256xf32>
    %10 = vector.shape_cast %9 : vector<1x1x256xf32> to vector<1x256xf32>
    %11 = vector.broadcast %10 : vector<1x256xf32> to vector<8x256xf32>
    %12 = arith.addf %8, %11 : vector<8x256xf32>
    %13 = arith.mulf %12, %12 : vector<8x256xf32>
    %14 = arith.mulf %12, %13 : vector<8x256xf32>
    %cst_9 = arith.constant 4.471500e-02 : f32
    %15 = vector.broadcast %cst_9 : f32 to vector<8x256xf32>
    %16 = arith.mulf %15, %14 : vector<8x256xf32>
    %17 = arith.addf %12, %16 : vector<8x256xf32>
    %cst_10 = arith.constant 0.797884583 : f32
    %18 = vector.broadcast %cst_10 : f32 to vector<8x256xf32>
    %19 = arith.mulf %18, %17 : vector<8x256xf32>
    %20 = math.tanh %19 : vector<8x256xf32>
    %cst_11 = arith.constant 1.000000e+00 : f32
    %21 = vector.broadcast %cst_11 : f32 to vector<8x256xf32>
    %22 = arith.addf %21, %20 : vector<8x256xf32>
    %cst_12 = arith.constant 5.000000e-01 : f32
    %23 = vector.broadcast %cst_12 : f32 to vector<8x256xf32>
    %24 = arith.mulf %23, %22 : vector<8x256xf32>
    %25 = arith.mulf %12, %24 : vector<8x256xf32>
    %26 = arith.truncf %25 : vector<8x256xf32> to vector<8x256xbf16>
    %c0_13 = arith.constant 0 : index
    %c0_14 = arith.constant 0 : index
    %c0_15 = arith.constant 0 : index
    %27 = vector.load %arg6[%c0_13, %c0_14, %c0_15] : memref<1x256x128xbf16, #tpu.memory_space<vmem>>, vector<1x256x128xbf16>
    %28 = vector.shape_cast %27 : vector<1x256x128xbf16> to vector<256x128xbf16>
    %cst_16 = arith.constant dense<0.000000e+00> : vector<8x128xf32>
    %29 = tpu.matmul %26, %28, %cst_16 {dimension_numbers = #tpu.dot_dimension_numbers<[1], [0], [0], [1], [0, 0, 1, 1], [], []>} : vector<8x256xbf16>, vector<256x128xbf16>, vector<8x128xf32> -> vector<8x128xf32>
    %c0_17 = arith.constant 0 : index
    %c0_18 = arith.constant 0 : index
    %c0_19 = arith.constant 0 : index
    %30 = vector.load %arg7[%c0_17, %c0_18, %c0_19] : memref<1x1x128xf32, #tpu.memory_space<vmem>>, vector<1x1x128xf32>
    %31 = vector.shape_cast %30 : vector<1x1x128xf32> to vector<1x128xf32>
    %32 = vector.broadcast %31 : vector<1x128xf32> to vector<8x128xf32>
    %33 = arith.addf %29, %32 : vector<8x128xf32>
    %c0_20 = arith.constant 0 : index
    %c0_21 = arith.constant 0 : index
    %34 = vector.load %arg11[%c0_20, %c0_21] : memref<8x128xf32, #tpu.memory_space<vmem>>, vector<8x128xf32>
    %35 = arith.addf %33, %34 : vector<8x128xf32>
    %cst_22 = arith.constant dense<0.000000e+00> : vector<8xf32>
    %36 = vector.multi_reduction <add>, %35, %cst_22 [1] : vector<8x128xf32> to vector<8xf32>
    %37 = vector.shape_cast %36 : vector<8xf32> to vector<8x1xf32>
    %cst_23 = arith.constant 1.280000e+02 : f32
    %38 = vector.broadcast %cst_23 : f32 to vector<8x1xf32>
    %39 = arith.divf %37, %38 : vector<8x1xf32>
    %40 = vector.broadcast %39 : vector<8x1xf32> to vector<8x128xf32>
    %41 = arith.subf %35, %40 : vector<8x128xf32>
    %42 = arith.mulf %41, %41 : vector<8x128xf32>
    %cst_24 = arith.constant dense<0.000000e+00> : vector<8xf32>
    %43 = vector.multi_reduction <add>, %42, %cst_24 [1] : vector<8x128xf32> to vector<8xf32>
    %44 = vector.shape_cast %43 : vector<8xf32> to vector<8x1xf32>
    %cst_25 = arith.constant 1.280000e+02 : f32
    %45 = vector.broadcast %cst_25 : f32 to vector<8x1xf32>
    %46 = arith.divf %44, %45 : vector<8x1xf32>
    %cst_26 = arith.constant 9.99999974E-6 : f32
    %47 = vector.broadcast %cst_26 : f32 to vector<8x1xf32>
    %48 = arith.addf %46, %47 : vector<8x1xf32>
    %49 = math.rsqrt %48 : vector<8x1xf32>
    %50 = vector.broadcast %49 : vector<8x1xf32> to vector<8x128xf32>
    %51 = arith.mulf %41, %50 : vector<8x128xf32>
    %c0_27 = arith.constant 0 : index
    %c0_28 = arith.constant 0 : index
    %c0_29 = arith.constant 0 : index
    %52 = vector.load %arg8[%c0_27, %c0_28, %c0_29] : memref<1x1x128xf32, #tpu.memory_space<vmem>>, vector<1x1x128xf32>
    %53 = vector.shape_cast %52 : vector<1x1x128xf32> to vector<1x128xf32>
    %54 = vector.broadcast %53 : vector<1x128xf32> to vector<8x128xf32>
    %55 = arith.mulf %51, %54 : vector<8x128xf32>
    %c0_30 = arith.constant 0 : index
    %c0_31 = arith.constant 0 : index
    %c0_32 = arith.constant 0 : index
    %56 = vector.load %arg9[%c0_30, %c0_31, %c0_32] : memref<1x1x128xf32, #tpu.memory_space<vmem>>, vector<1x1x128xf32>
    %57 = vector.shape_cast %56 : vector<1x1x128xf32> to vector<1x128xf32>
    %58 = vector.broadcast %57 : vector<1x128xf32> to vector<8x128xf32>
    %59 = arith.addf %55, %58 : vector<8x128xf32>
    %c0_33 = arith.constant 0 : index
    %c0_34 = arith.constant 0 : index
    %60 = vector.load %arg11[%c0_33, %c0_34] : memref<8x128xf32, #tpu.memory_space<vmem>>, vector<8x128xf32>
    tpu.vector_store %arg11[%c0_33, %c0_34], %59 {strides = array<i32>} : memref<8x128xf32, #tpu.memory_space<vmem>>, vector<8x128xf32>,
    %61 = arith.truncf %59 : vector<8x128xf32> to vector<8x128xbf16>
    %c0_35 = arith.constant 0 : index
    %c0_36 = arith.constant 0 : index
    %62 = vector.load %arg12[%c0_35, %c0_36] : memref<8x128xbf16, #tpu.memory_space<vmem>>, vector<8x128xbf16>
    tpu.vector_store %arg12[%c0_35, %c0_36], %61 {strides = array<i32>} : memref<8x128xbf16, #tpu.memory_space<vmem>>, vector<8x128xbf16>,
    %c1_i32 = arith.constant 1 : i32
    %63 = arith.cmpi eq, %arg1, %c1_i32 : i32
    %64 = arith.extui %63 : i1 to i32
    %c0_i32_37 = arith.constant 0 : i32
    %65 = arith.cmpi ne, %64, %c0_i32_37 : i32
    scf.if %65 {
      %c0_38 = arith.constant 0 : index
      %c0_39 = arith.constant 0 : index
      %66 = vector.load %arg10[%c0_38, %c0_39] : memref<8x128xf32, #tpu.memory_space<vmem>>, vector<8x128xf32>
      tpu.vector_store %arg10[%c0_38, %c0_39], %59 {strides = array<i32>} : memref<8x128xf32, #tpu.memory_space<vmem>>, vector<8x128xf32>,
    } else {
    }
    return
  }
  func.func @transform_0(%arg0: i32, %arg1: i32, %arg2: i32) -> (i32, i32) {
    %c0_i32 = arith.constant 0 : i32
    %c0_i32_0 = arith.constant 0 : i32
    return %arg0, %c0_i32 : i32, i32
  }
  func.func @transform_1(%arg0: i32, %arg1: i32, %arg2: i32) -> (i32, i32, i32) {
    %c0_i32 = arith.constant 0 : i32
    %c0_i32_0 = arith.constant 0 : i32
    return %arg1, %c0_i32, %arg2 : i32, i32, i32
  }
  func.func @transform_2(%arg0: i32, %arg1: i32, %arg2: i32) -> (i32, i32, i32) {
    %c0_i32 = arith.constant 0 : i32
    %c0_i32_0 = arith.constant 0 : i32
    return %arg1, %c0_i32, %arg2 : i32, i32, i32
  }
  func.func @transform_3(%arg0: i32, %arg1: i32, %arg2: i32) -> (i32, i32, i32) {
    %c0_i32 = arith.constant 0 : i32
    %c0_i32_0 = arith.constant 0 : i32
    return %arg1, %arg2, %c0_i32 : i32, i32, i32
  }
  func.func @transform_4(%arg0: i32, %arg1: i32, %arg2: i32) -> (i32, i32, i32) {
    %c0_i32 = arith.constant 0 : i32
    %c0_i32_0 = arith.constant 0 : i32
    %c0_i32_1 = arith.constant 0 : i32
    return %arg1, %c0_i32, %c0_i32_0 : i32, i32, i32
  }
  func.func @transform_5(%arg0: i32, %arg1: i32, %arg2: i32) -> (i32, i32, i32) {
    %c0_i32 = arith.constant 0 : i32
    %c0_i32_0 = arith.constant 0 : i32
    %c0_i32_1 = arith.constant 0 : i32
    return %arg1, %c0_i32, %c0_i32_0 : i32, i32, i32
  }
  func.func @transform_6(%arg0: i32, %arg1: i32, %arg2: i32) -> (i32, i32, i32) {
    %c0_i32 = arith.constant 0 : i32
    %c0_i32_0 = arith.constant 0 : i32
    %c0_i32_1 = arith.constant 0 : i32
    return %arg1, %c0_i32, %c0_i32_0 : i32, i32, i32
  }
  func.func @transform_7(%arg0: i32, %arg1: i32, %arg2: i32) -> (i32, i32) {
    %c0_i32 = arith.constant 0 : i32
    %c0_i32_0 = arith.constant 0 : i32
    return %arg0, %c0_i32 : i32, i32
  }
}

</mosaic_0001>

<llo_original>
// kernel: encoder_forward.1
$region0: #{encoder_forward.1}
  #allocation0 [shape = 'u32[]', space=smem, size = 0x4, offset = 0x4, fixed_abs, tag = 'smem constant byte address 0x4 - core index']
  #allocation1 [shape = 'u32[144,128]{1,0:T(1,128)}', space=vmem, size = 0x12000, scoped, tag = 'internal scratch']
  #allocation2 [shape = 'f32[8,128]{1,0:T(8,128)}', space=vmem, size = 0x1000, scoped, tag = 'scratch operand']
  #allocation3 [shape = 'bf16[8,128]{1,0:T(8,128)(2,1)}', space=vmem, size = 0x800, scoped, tag = 'scratch operand']
  #allocation4 [shape = 'f32[8,128]{1,0:T(8,128)}', space=vmem, size = 0x1000, scoped, tag = 'scratch operand']
  %s0 = inlined_call_operand.hbm [shape: f32[16,128], index: 0, kind: input, shape index: {}]
  %s1 = inlined_call_operand.hbm [shape: bf16[2,128,256], index: 1, kind: input, shape index: {}]
  %s2 = inlined_call_operand.vmem [shape: f32[2,1,256], index: 2, kind: input, shape index: {}]
  %s3 = inlined_call_operand.hbm [shape: bf16[2,256,128], index: 3, kind: input, shape index: {}]
  %s4 = inlined_call_operand.vmem [shape: f32[2,1,128], index: 4, kind: input, shape index: {}, may-alias: {4,6}]
  %s5 = inlined_call_operand.vmem [shape: f32[2,1,128], index: 5, kind: input, shape index: {}]
  %s6 = inlined_call_operand.vmem [shape: f32[2,1,128], index: 6, kind: input, shape index: {}, may-alias: {4,6}]
  %s7 = inlined_call_operand.hbm [shape: f32[16,128], index: 7, kind: output, shape index: {}]
  %s8 = sld [smem:[#allocation0]]
  $region81: #{encoder_forward.1} parent=0
    _
  %s10 = ssub.s32 1, %s8
  %s11 = scalar_select 0, %s10, %s8
  $region1: #{encoder_forward.1} parent=0
    #allocation5 [shape = 'u8[8192]{0}', space=vmem, size = 0x2000, scoped, tag = 'input window, operand 0']
    #allocation6 [shape = 's32[2]{0}', space=sflag, size = 0x8, scoped, tag = 'scoped memory for encoder_forward.1']
    #allocation7 [shape = 's32[2]{0}', space=sflag, size = 0x8, scoped, tag = 'scoped memory for encoder_forward.1']
    #allocation8 [shape = 'u8[131072]{0}', space=vmem, size = 0x20000, scoped, tag = 'input window, operand 1']
    #allocation9 [shape = 's32[2]{0}', space=sflag, size = 0x8, scoped, tag = 'scoped memory for encoder_forward.1']
    #allocation10 [shape = 'u8[131072]{0}', space=vmem, size = 0x20000, scoped, tag = 'input window, operand 3']
    #allocation11 [shape = 'u8[8192]{0}', space=vmem, size = 0x2000, scoped, tag = 'output window, operand 0']
    %12 = vsyncpa [#allocation6], 0
    %s13 = scalar_lea.sflag [#allocation6], 1
    %14 = vsyncpa %s13, 0
    %15 = vsyncpa [#allocation9], 0
    %s16 = scalar_lea.sflag [#allocation9], 1
    %17 = vsyncpa %s16, 0
    %18 = vsyncpa [#allocation7], 0
    %s19 = scalar_lea.sflag [#allocation7], 1
    %20 = vsyncpa %s19, 0
    loop: start=0, step=1, limit=6
    $region2: #{encoder_forward.1} parent=1 // loop_pre_header
      _
    $region3: #{encoder_forward.1} parent=1 // loop_header
      %s22 = sphi 0, %s26
      %p23 = scmp.ge.s32.totalorder %s22, 6
      %s29 = sphi 0, %s48
      %s30 = sphi 0, %s44
      %s31 = sphi 0, %s40
      %s32 = sphi 0, %s29
      %s33 = sphi 0, %s30
      %s34 = sphi 0, %s31
      %s35 = sphi 0, %s32
      %s36 = sphi 0, %s33
      %s37 = sphi 0, %s34
      %s51 = sphi 0, %s53
      %s54 = sphi 0, %s51
      %s55 = sphi 0, %s54
      %s71 = sphi 0, %s55
      %s79 = sphi 0, %s81
      %s82 = sphi 0, %s79
      %s83 = sphi 0, %s82
      %s99 = sphi 0, %s83
      %s107 = sphi 0, %s109
      %s110 = sphi 0, %s107
      %s111 = sphi 0, %s110
      %s127 = sphi 0, %s111
      %s135 = sphi 0, %s137
      %s138 = sphi 0, %s135
      %s139 = sphi 0, %s138
      %s155 = sphi 0, %s139
      %s161 = sphi 0, %s163
      %s164 = sphi 0, %s161
      %s165 = sphi 0, %s164
      %s181 = sphi 0, %s165
      %s187 = sphi 0, %s189
      %s190 = sphi 0, %s187
      %s191 = sphi 0, %s190
      %s207 = sphi 0, %s191
      %s213 = sphi 0, %s215
      %s216 = sphi 0, %s213
      %s217 = sphi 0, %s216
      %s233 = sphi 0, %s217
      %s239 = sphi 0, %s241
      %s242 = sphi 0, %s239
      %s243 = sphi 0, %s242
      %s259 = sphi 0, %s243
    $region4: #{encoder_forward.1} parent=1 // loop_header_branch
      %25 = sbr.rel (%p23) target = $region8
    $region5: #{encoder_forward.1} parent=1 // loop_body
      %s27 = ssub.s32 %s22, 1
      %s28 = ssub.s32 %s22, 2
      %s38 = sadd.s32 1, %s31
      %p39 = scmp.ge.s32.totalorder %s38, 1
      %s40 = scalar_select %p39, 0, %s38
      %s41 = sadd.s32 1, %s30
      %s42 = scalar_select %p39, %s41, %s30
      %p43 = scmp.ge.s32.totalorder %s42, 2
      %s44 = scalar_select %p43, 0, %s42
      %s45 = sadd.s32 1, %s29
      %s46 = scalar_select %p43, %s45, %s29
      %p47 = scmp.ge.s32.totalorder %s46, 2
      %s48 = scalar_select %p47, 0, %s46
      %s49 = ssub.s32 %s29, %s48
      %p50 = scmp.eq.s32.totalorder %s49, 0
      %s52 = sadd.s32 %s51, 1
      %s53 = scalar_select %p50, %s51, %s52
      %p56 = pneg %p50
      %p57 = scmp.eq.s32.totalorder %s22, 3
      %p58 = por %p56, %p57
      %p59 = scmp.ne.s32.totalorder %s51, %s54
      %p60 = scmp.eq.s32.totalorder %s22, 0
      %p61 = por %p59, %p60
      %p62 = scmp.ne.s32.totalorder %s51, %s54
      %p63 = scmp.eq.s32.totalorder %s27, 3
      %p64 = por %p62, %p63
      %p65 = scmp.ne.s32.totalorder %s54, %s55
      %p66 = scmp.eq.s32.totalorder %s27, 0
      %p67 = por %p65, %p66
      %p68 = scmp.ne.s32.totalorder %s54, %s55
      %p69 = scmp.eq.s32.totalorder %s28, 3
      %p70 = por %p68, %p69
      %p72 = scmp.ne.s32.totalorder %s55, %s71
      %p73 = scmp.eq.s32.totalorder %s28, 0
      %p74 = por %p72, %p73
      %s75 = ssub.s32 %s30, %s44
      %s76 = ssub.s32 %s31, %s40
      %s77 = sor.u32 %s75, %s76
      %p78 = scmp.eq.s32.totalorder %s77, 0
      %s80 = sadd.s32 %s79, 1
      %s81 = scalar_select %p78, %s79, %s80
      %p84 = pneg %p78
      %p85 = scmp.eq.s32.totalorder %s22, 3
      %p86 = por %p84, %p85
      %p87 = scmp.ne.s32.totalorder %s79, %s82
      %p88 = scmp.eq.s32.totalorder %s22, 0
      %p89 = por %p87, %p88
      %p90 = scmp.ne.s32.totalorder %s79, %s82
      %p91 = scmp.eq.s32.totalorder %s27, 3
      %p92 = por %p90, %p91
      %p93 = scmp.ne.s32.totalorder %s82, %s83
      %p94 = scmp.eq.s32.totalorder %s27, 0
      %p95 = por %p93, %p94
      %p96 = scmp.ne.s32.totalorder %s82, %s83
      %p97 = scmp.eq.s32.totalorder %s28, 3
      %p98 = por %p96, %p97
      %p100 = scmp.ne.s32.totalorder %s83, %s99
      %p101 = scmp.eq.s32.totalorder %s28, 0
      %p102 = por %p100, %p101
      %s103 = ssub.s32 %s30, %s44
      %s104 = ssub.s32 %s31, %s40
      %s105 = sor.u32 %s103, %s104
      %p106 = scmp.eq.s32.totalorder %s105, 0
      %s108 = sadd.s32 %s107, 1
      %s109 = scalar_select %p106, %s107, %s108
      %p112 = pneg %p106
      %p113 = scmp.eq.s32.totalorder %s22, 3
      %p114 = por %p112, %p113
      %p115 = scmp.ne.s32.totalorder %s107, %s110
      %p116 = scmp.eq.s32.totalorder %s22, 0
      %p117 = por %p115, %p116
      %p118 = scmp.ne.s32.totalorder %s107, %s110
      %p119 = scmp.eq.s32.totalorder %s27, 3
      %p120 = por %p118, %p119
      %p121 = scmp.ne.s32.totalorder %s110, %s111
      %p122 = scmp.eq.s32.totalorder %s27, 0
      %p123 = por %p121, %p122
      %p124 = scmp.ne.s32.totalorder %s110, %s111
      %p125 = scmp.eq.s32.totalorder %s28, 3
      %p126 = por %p124, %p125
      %p128 = scmp.ne.s32.totalorder %s111, %s127
      %p129 = scmp.eq.s32.totalorder %s28, 0
      %p130 = por %p128, %p129
      %s131 = ssub.s32 %s30, %s44
      %s132 = ssub.s32 %s31, %s40
      %s133 = sor.u32 %s131, %s132
      %p134 = scmp.eq.s32.totalorder %s133, 0
      %s136 = sadd.s32 %s135, 1
      %s137 = scalar_select %p134, %s135, %s136
      %p140 = pneg %p134
      %p141 = scmp.eq.s32.totalorder %s22, 3
      %p142 = por %p140, %p141
      %p143 = scmp.ne.s32.totalorder %s135, %s138
      %p144 = scmp.eq.s32.totalorder %s22, 0
      %p145 = por %p143, %p144
      %p146 = scmp.ne.s32.totalorder %s135, %s138
      %p147 = scmp.eq.s32.totalorder %s27, 3
      %p148 = por %p146, %p147
      %p149 = scmp.ne.s32.totalorder %s138, %s139
      %p150 = scmp.eq.s32.totalorder %s27, 0
      %p151 = por %p149, %p150
      %p152 = scmp.ne.s32.totalorder %s138, %s139
      %p153 = scmp.eq.s32.totalorder %s28, 3
      %p154 = por %p152, %p153
      %p156 = scmp.ne.s32.totalorder %s139, %s155
      %p157 = scmp.eq.s32.totalorder %s28, 0
      %p158 = por %p156, %p157
      %s159 = ssub.s32 %s30, %s44
      %p160 = scmp.eq.s32.totalorder %s159, 0
      %s162 = sadd.s32 %s161, 1
      %s163 = scalar_select %p160, %s161, %s162
      %p166 = pneg %p160
      %p167 = scmp.eq.s32.totalorder %s22, 3
      %p168 = por %p166, %p167
      %p169 = scmp.ne.s32.totalorder %s161, %s164
      %p170 = scmp.eq.s32.totalorder %s22, 0
      %p171 = por %p169, %p170
      %p172 = scmp.ne.s32.totalorder %s161, %s164
      %p173 = scmp.eq.s32.totalorder %s27, 3
      %p174 = por %p172, %p173
      %p175 = scmp.ne.s32.totalorder %s164, %s165
      %p176 = scmp.eq.s32.totalorder %s27, 0
      %p177 = por %p175, %p176
      %p178 = scmp.ne.s32.totalorder %s164, %s165
      %p179 = scmp.eq.s32.totalorder %s28, 3
      %p180 = por %p178, %p179
      %p182 = scmp.ne.s32.totalorder %s165, %s181
      %p183 = scmp.eq.s32.totalorder %s28, 0
      %p184 = por %p182, %p183
      %s185 = ssub.s32 %s30, %s44
      %p186 = scmp.eq.s32.totalorder %s185, 0
      %s188 = sadd.s32 %s187, 1
      %s189 = scalar_select %p186, %s187, %s188
      %p192 = pneg %p186
      %p193 = scmp.eq.s32.totalorder %s22, 3
      %p194 = por %p192, %p193
      %p195 = scmp.ne.s32.totalorder %s187, %s190
      %p196 = scmp.eq.s32.totalorder %s22, 0
      %p197 = por %p195, %p196
      %p198 = scmp.ne.s32.totalorder %s187, %s190
      %p199 = scmp.eq.s32.totalorder %s27, 3
      %p200 = por %p198, %p199
      %p201 = scmp.ne.s32.totalorder %s190, %s191
      %p202 = scmp.eq.s32.totalorder %s27, 0
      %p203 = por %p201, %p202
      %p204 = scmp.ne.s32.totalorder %s190, %s191
      %p205 = scmp.eq.s32.totalorder %s28, 3
      %p206 = por %p204, %p205
      %p208 = scmp.ne.s32.totalorder %s191, %s207
      %p209 = scmp.eq.s32.totalorder %s28, 0
      %p210 = por %p208, %p209
      %s211 = ssub.s32 %s30, %s44
      %p212 = scmp.eq.s32.totalorder %s211, 0
      %s214 = sadd.s32 %s213, 1
      %s215 = scalar_select %p212, %s213, %s214
      %p218 = pneg %p212
      %p219 = scmp.eq.s32.totalorder %s22, 3
      %p220 = por %p218, %p219
      %p221 = scmp.ne.s32.totalorder %s213, %s216
      %p222 = scmp.eq.s32.totalorder %s22, 0
      %p223 = por %p221, %p222
      %p224 = scmp.ne.s32.totalorder %s213, %s216
      %p225 = scmp.eq.s32.totalorder %s27, 3
      %p226 = por %p224, %p225
      %p227 = scmp.ne.s32.totalorder %s216, %s217
      %p228 = scmp.eq.s32.totalorder %s27, 0
      %p229 = por %p227, %p228
      %p230 = scmp.ne.s32.totalorder %s216, %s217
      %p231 = scmp.eq.s32.totalorder %s28, 3
      %p232 = por %p230, %p231
      %p234 = scmp.ne.s32.totalorder %s217, %s233
      %p235 = scmp.eq.s32.totalorder %s28, 0
      %p236 = por %p234, %p235
      %s237 = ssub.s32 %s29, %s48
      %p238 = scmp.eq.s32.totalorder %s237, 0
      %s240 = sadd.s32 %s239, 1
      %s241 = scalar_select %p238, %s239, %s240
      %p244 = pneg %p238
      %p245 = scmp.eq.s32.totalorder %s22, 3
      %p246 = por %p244, %p245
      %p247 = scmp.ne.s32.totalorder %s239, %s242
      %p248 = scmp.eq.s32.totalorder %s22, 0
      %p249 = por %p247, %p248
      %p250 = scmp.ne.s32.totalorder %s239, %s242
      %p251 = scmp.eq.s32.totalorder %s27, 3
      %p252 = por %p250, %p251
      %p253 = scmp.ne.s32.totalorder %s242, %s243
      %p254 = scmp.eq.s32.totalorder %s27, 0
      %p255 = por %p253, %p254
      %p256 = scmp.ne.s32.totalorder %s242, %s243
      %p257 = scmp.eq.s32.totalorder %s28, 3
      %p258 = por %p256, %p257
      %p260 = scmp.ne.s32.totalorder %s243, %s259
      %p261 = scmp.eq.s32.totalorder %s28, 0
      %p262 = por %p260, %p261
      %p263 = scmp.le.s32.totalorder 1, %s22
      %p264 = scmp.lt.s32.totalorder %s22, 5
      %p265 = pnand %p263, %p264
      %p266 = pneg %p265
      // Predicated region
      $region9: #{encoder_forward.1} parent=5 // pred_check
        _
      $region10: #{encoder_forward.1} parent=5 // pred_check_branch
        %268 = sbr.rel (%p265) target = $region12
      $region11: #{encoder_forward.1} parent=5 // pred_region
        %s269 = ssub.s32 %s22, 1
      $region12: #{encoder_forward.1} parent=5 // pred_fallthru
        _
      %p270 = scmp.lt.s32.totalorder %s22, 4
      // Predicated region
      $region13: #{encoder_forward.1} parent=5 // pred_check
        %p271 = pneg %p270
      $region14: #{encoder_forward.1} parent=5 // pred_check_branch
        %273 = sbr.rel (%p271) target = $region16
      $region15: #{encoder_forward.1} parent=5 // pred_region
        // Predicated region
        $region17: #{encoder_forward.1} parent=15 // pred_check
          %p274 = pneg %p61
        $region18: #{encoder_forward.1} parent=15 // pred_check_branch
          %276 = sbr.rel (%p274) target = $region20
        $region19: #{encoder_forward.1} parent=15 // pred_region
          %s277 = sand.u32 %s51, 1
          %s278 = scalar_lea.sflag [#allocation6], %s277
          %s279 = sand.u32 %s51, 1
          %s280 = smul.addr %s279, 8
          %s281 = scalar_lea.vmem [#allocation5], %s280
          %s283 = ssub.s32 128, 128
          %284 = vsyncadd %s278, %s283
          %s285 = smul.addr %s29, 128
          %s286 = scalar_lea.hbm %s0, %s285
          %s288 = sshll.u32 %s281, 4
          %s289 = int_to_ptr.vmem [resolvable:$true] %s288
          %291 = dma.hbm_to_vmem [thread:$0]  %s286, 128, %s289, %s278
        $region20: #{encoder_forward.1} parent=15 // pred_fallthru
          _
        // Predicated region
        $region21: #{encoder_forward.1} parent=15 // pred_check
          %p292 = pneg %p89
        $region22: #{encoder_forward.1} parent=15 // pred_check_branch
          %294 = sbr.rel (%p292) target = $region24
        $region23: #{encoder_forward.1} parent=15 // pred_region
          %s295 = sand.u32 %s22, 1
          %s296 = scalar_lea.sflag [#allocation9], %s295
          %s297 = sand.u32 %s79, 1
          %s298 = smul.addr %s297, 128
          %s299 = scalar_lea.vmem [#allocation8], %s298
          %s300 = smul.u32 2, %s31
          %s302 = ssub.s32 2048, 2048
          %303 = vsyncadd %s296, %s302
          %s304 = smul.addr %s30, 32
          %s305 = sadd.s32 %s300, %s304
          %s306 = smul.addr %s305, 64
          %s307 = scalar_lea.hbm %s1, %s306
          %s308 = sshll.u32 %s299, 4
          %s309 = int_to_ptr.vmem [resolvable:$true] %s308
          %314 = dma.hbm_to_vmem [thread:$0]  %s307, 2048, %s309, %s296, 128, 128, 8
        $region24: #{encoder_forward.1} parent=15 // pred_fallthru
          _
        // Predicated region
        $region25: #{encoder_forward.1} parent=15 // pred_check
          %p315 = pneg %p117
        $region26: #{encoder_forward.1} parent=15 // pred_check_branch
          %317 = sbr.rel (%p315) target = $region28
        $region27: #{encoder_forward.1} parent=15 // pred_region
          %s318 = smul.u32 2, %s31
          %p319 = scmp.lt.s32.totalorder %s30, 1
          %s320 = scalar_select %p319, %s30, 1
          %p321 = scmp.lt.s32.totalorder %s318, 1
          %s322 = scalar_select %p321, %s318, 1
          %s323 = smul.addr %s320, 2
          %s324 = sadd.s32 %s322, %s323
          %s325 = scalar_lea.vmem %s2, %s324
          %s326 = smul.u32 2, %s31
        $region28: #{encoder_forward.1} parent=15 // pred_fallthru
          _
        // Predicated region
        $region29: #{encoder_forward.1} parent=15 // pred_check
          %p327 = pneg %p145
        $region30: #{encoder_forward.1} parent=15 // pred_check_branch
          %329 = sbr.rel (%p327) target = $region32
        $region31: #{encoder_forward.1} parent=15 // pred_region
          %s330 = sand.u32 %s22, 1
          %s331 = scalar_lea.sflag [#allocation9], %s330
          %s332 = sand.u32 %s135, 1
          %s333 = smul.addr %s332, 128
          %s334 = scalar_lea.vmem [#allocation10], %s333
          %s335 = smul.u32 32, %s31
          %s337 = ssub.s32 2048, 2048
          %338 = vsyncadd %s331, %s337
          %s339 = smul.addr %s30, 32
          %s340 = sadd.s32 %s335, %s339
          %s341 = smul.addr %s340, 64
          %s342 = scalar_lea.hbm %s3, %s341
          %s343 = sshll.u32 %s334, 4
          %s344 = int_to_ptr.vmem [resolvable:$true] %s343
          %349 = dma.hbm_to_vmem [thread:$0]  %s342, 2048, %s344, %s331, 64, 64, 4
        $region32: #{encoder_forward.1} parent=15 // pred_fallthru
          _
        // Predicated region
        $region33: #{encoder_forward.1} parent=15 // pred_check
          %p350 = pneg %p171
        $region34: #{encoder_forward.1} parent=15 // pred_check_branch
          %352 = sbr.rel (%p350) target = $region36
        $region35: #{encoder_forward.1} parent=15 // pred_region
          %p353 = scmp.lt.s32.totalorder %s30, 1
          %s354 = scalar_select %p353, %s30, 1
          %s355 = scalar_lea.vmem %s4, %s354
        $region36: #{encoder_forward.1} parent=15 // pred_fallthru
          _
        // Predicated region
        $region37: #{encoder_forward.1} parent=15 // pred_check
          %p356 = pneg %p197
        $region38: #{encoder_forward.1} parent=15 // pred_check_branch
          %358 = sbr.rel (%p356) target = $region40
        $region39: #{encoder_forward.1} parent=15 // pred_region
          %p359 = scmp.lt.s32.totalorder %s30, 1
          %s360 = scalar_select %p359, %s30, 1
          %s361 = scalar_lea.vmem %s5, %s360
        $region40: #{encoder_forward.1} parent=15 // pred_fallthru
          _
        // Predicated region
        $region41: #{encoder_forward.1} parent=15 // pred_check
          %p362 = pneg %p223
        $region42: #{encoder_forward.1} parent=15 // pred_check_branch
          %364 = sbr.rel (%p362) target = $region44
        $region43: #{encoder_forward.1} parent=15 // pred_region
          %p365 = scmp.lt.s32.totalorder %s30, 1
          %s366 = scalar_select %p365, %s30, 1
          %s367 = scalar_lea.vmem %s6, %s366
        $region44: #{encoder_forward.1} parent=15 // pred_fallthru
          _
      $region16: #{encoder_forward.1} parent=5 // pred_fallthru
        _
      %p368 = scmp.le.s32.totalorder 1, %s22
      %p369 = scmp.lt.s32.totalorder %s22, 5
      %p370 = pnand %p368, %p369
      %p371 = pneg %p370
      // Predicated region
      $region45: #{encoder_forward.1} parent=5 // pred_check
        _
      $region46: #{encoder_forward.1} parent=5 // pred_check_branch
        %373 = sbr.rel (%p370) target = $region48
      $region47: #{encoder_forward.1} parent=5 // pred_region
        %s374 = ssub.s32 %s22, 1
        %s375 = sand.u32 %s54, 1
        %s376 = scalar_lea.sflag [#allocation6], %s375
        %s377 = sand.u32 %s54, 1
        %s378 = smul.addr %s377, 8
        %s379 = scalar_lea.vmem [#allocation5], %s378
        // Predicated region
        $region49: #{encoder_forward.1} parent=47 // pred_check
          %p380 = pneg %p67
        $region50: #{encoder_forward.1} parent=47 // pred_check_branch
          %382 = sbr.rel (%p380) target = $region52
        $region51: #{encoder_forward.1} parent=47 // pred_region
          %383 = dma.done %s376, 128
        $region52: #{encoder_forward.1} parent=47 // pred_fallthru
          _
        %s384 = sand.u32 %s27, 1
        %s385 = scalar_lea.sflag [#allocation9], %s384
        %s386 = sand.u32 %s82, 1
        %s387 = smul.addr %s386, 128
        %s388 = scalar_lea.vmem [#allocation8], %s387
        // Predicated region
        $region53: #{encoder_forward.1} parent=47 // pred_check
          %p389 = pneg %p95
        $region54: #{encoder_forward.1} parent=47 // pred_check_branch
          %391 = sbr.rel (%p389) target = $region56
        $region55: #{encoder_forward.1} parent=47 // pred_region
          %392 = dma.done %s385, 2048
        $region56: #{encoder_forward.1} parent=47 // pred_fallthru
          _
        %s393 = sand.u32 %s27, 1
        %s394 = scalar_lea.sflag [#allocation9], %s393
        %s395 = sand.u32 %s138, 1
        %s396 = smul.addr %s395, 128
        %s397 = scalar_lea.vmem [#allocation10], %s396
        // Predicated region
        $region57: #{encoder_forward.1} parent=47 // pred_check
          %p398 = pneg %p151
        $region58: #{encoder_forward.1} parent=47 // pred_check_branch
          %400 = sbr.rel (%p398) target = $region60
        $region59: #{encoder_forward.1} parent=47 // pred_region
          %401 = dma.done %s394, 2048
        $region60: #{encoder_forward.1} parent=47 // pred_fallthru
          _
        %s402 = sand.u32 %s54, 1
        %s403 = scalar_lea.sflag [#allocation6], %s402
        %s404 = sand.u32 %s54, 1
        %s405 = smul.addr %s404, 8
        %s406 = scalar_lea.vmem [#allocation5], %s405
        %p407 = pneg %p67
        %p408 = pneg %p64
        %s409 = sand.u32 %s27, 1
        %s410 = scalar_lea.sflag [#allocation9], %s409
        %s411 = sand.u32 %s82, 1
        %s412 = smul.addr %s411, 128
        %s413 = scalar_lea.vmem [#allocation8], %s412
        %p414 = pneg %p95
        %p415 = pneg %p92
        %s416 = smul.u32 2, %s34
        %p417 = scmp.lt.s32.totalorder %s33, 1
        %s418 = scalar_select %p417, %s33, 1
        %p419 = scmp.lt.s32.totalorder %s416, 1
        %s420 = scalar_select %p419, %s416, 1
        %s421 = smul.addr %s418, 2
        %s422 = sadd.s32 %s420, %s421
        %s423 = scalar_lea.vmem %s2, %s422
        %p424 = pneg %p123
        %p425 = pneg %p120
        %s426 = sand.u32 %s27, 1
        %s427 = scalar_lea.sflag [#allocation9], %s426
        %s428 = sand.u32 %s138, 1
        %s429 = smul.addr %s428, 128
        %s430 = scalar_lea.vmem [#allocation10], %s429
        %p431 = pneg %p151
        %p432 = pneg %p148
        %p433 = scmp.lt.s32.totalorder %s33, 1
        %s434 = scalar_select %p433, %s33, 1
        %s435 = scalar_lea.vmem %s4, %s434
        %p436 = pneg %p177
        %p437 = pneg %p174
        %p438 = scmp.lt.s32.totalorder %s33, 1
        %s439 = scalar_select %p438, %s33, 1
        %s440 = scalar_lea.vmem %s5, %s439
        %p441 = pneg %p203
        %p442 = pneg %p200
        %p443 = scmp.lt.s32.totalorder %s33, 1
        %s444 = scalar_select %p443, %s33, 1
        %s445 = scalar_lea.vmem %s6, %s444
        %p446 = pneg %p229
        %p447 = pneg %p226
        %p448 = pneg %p255
        %p449 = pneg %p252
        %s450 = sand.u32 %s242, 1
        %s451 = scalar_lea.sflag [#allocation7], %s450
        %s452 = sand.u32 %s242, 1
        %s453 = smul.addr %s452, 8
        %s454 = scalar_lea.vmem [#allocation11], %s453
        %s455 = smul.u32 2, %s34
        %s456 = smul.u32 2, %s34
        %p457 = scmp.lt.s32.totalorder %s33, 1
        %s458 = scalar_select %p457, %s33, 1
        %p459 = scmp.lt.s32.totalorder %s456, 1
        %s460 = scalar_select %p459, %s456, 1
        %s461 = smul.addr %s458, 2
        %s462 = sadd.s32 %s460, %s461
        %s463 = scalar_lea.vmem %s2, %s462
        %s464 = smul.u32 2, %s34
        %s465 = smul.u32 32, %s34
        %p466 = scmp.lt.s32.totalorder %s33, 1
        %s467 = scalar_select %p466, %s33, 1
        %s468 = scalar_lea.vmem %s4, %s467
        %p469 = scmp.lt.s32.totalorder %s33, 1
        %s470 = scalar_select %p469, %s33, 1
        %s471 = scalar_lea.vmem %s5, %s470
        %p472 = scmp.lt.s32.totalorder %s33, 1
        %s473 = scalar_select %p472, %s33, 1
        %s474 = scalar_lea.vmem %s6, %s473
        %p476 = scmp.eq.s32.totalorder %s33, 0
        %p477 = scmp.eq.s32.totalorder %s34, 0
        %p478 = pnand %p476, %p477
        %p479 = pneg %p478
        // Predicated region
        $region61: #{encoder_forward.1} parent=47 // pred_check
          _
        $region62: #{encoder_forward.1} parent=47 // pred_check_branch
          %481 = sbr.rel (%p478) target = $region64
        $region63: #{encoder_forward.1} parent=47 // pred_region
          %v482 = vld [vmem:[%s379] sm:$0xff]
          %483 = vst [vmem:[#allocation2] sm:$0xff] %v482
          %v484 = vpack.c.bf16 %v482, %v482
          %485 = vst [vmem:[#allocation3] sm:$0xf] %v484
        $region64: #{encoder_forward.1} parent=47 // pred_fallthru
          _
        %v486 = vld [vmem:[#allocation3] sm:$0xf]
        %v487 = vld [vmem:[%s388] sm:$0xff]
        %v488 = vld [vmem:[%s388 + $0x8] sm:$0xff]
        %v489 = vld [vmem:[%s388 + $0x10] sm:$0xff]
        %v490 = vld [vmem:[%s388 + $0x18] sm:$0xff]
        %v491 = vld [vmem:[%s388 + $0x20] sm:$0xff]
        %v492 = vld [vmem:[%s388 + $0x28] sm:$0xff]
        %v493 = vld [vmem:[%s388 + $0x30] sm:$0xff]
        %v494 = vld [vmem:[%s388 + $0x38] sm:$0xff]
        %v495 = vld [vmem:[%s388 + $0x40] sm:$0xff]
        %v496 = vld [vmem:[%s388 + $0x48] sm:$0xff]
        %v497 = vld [vmem:[%s388 + $0x50] sm:$0xff]
        %v498 = vld [vmem:[%s388 + $0x58] sm:$0xff]
        %v499 = vld [vmem:[%s388 + $0x60] sm:$0xff]
        %v500 = vld [vmem:[%s388 + $0x68] sm:$0xff]
        %v501 = vld [vmem:[%s388 + $0x70] sm:$0xff]
        %v502 = vld [vmem:[%s388 + $0x78] sm:$0xff]
        %v503 = vld [vmem:[%s463] sm:$0x3]
        %v505 = vlaneseq
        %v506 = vshrl.u32 %v505, 7
        %v507 = vsub.s32 0, %v506
        %v508 = vrot.slane %v503, %v507
        %v509 = vlaneseq
        %v510 = vshrl.u32 %v509, 7
        %v511 = vsub.s32 1, %v510
        %v512 = vrot.slane %v503, %v511
        %v531 = vunpack.c.l.b16 %v487
        %v532 = vunpack.c.h.b16 %v487
        %v533 = vunpack.c.l.b16 %v488
        %v534 = vunpack.c.h.b16 %v488
        %v535 = vunpack.c.l.b16 %v489
        %v536 = vunpack.c.h.b16 %v489
        %v537 = vunpack.c.l.b16 %v490
        %v538 = vunpack.c.h.b16 %v490
        %v539 = vunpack.c.l.b16 %v491
        %v540 = vunpack.c.h.b16 %v491
        %v541 = vunpack.c.l.b16 %v492
        %v542 = vunpack.c.h.b16 %v492
        %v543 = vunpack.c.l.b16 %v493
        %v544 = vunpack.c.h.b16 %v493
        %v545 = vunpack.c.l.b16 %v494
        %v546 = vunpack.c.h.b16 %v494
        %v547 = vunpack.c.l.b16 %v495
        %v548 = vunpack.c.h.b16 %v495
        %v549 = vunpack.c.l.b16 %v496
        %v550 = vunpack.c.h.b16 %v496
        %v551 = vunpack.c.l.b16 %v497
        %v552 = vunpack.c.h.b16 %v497
        %v553 = vunpack.c.l.b16 %v498
        %v554 = vunpack.c.h.b16 %v498
        %v555 = vunpack.c.l.b16 %v499
        %v556 = vunpack.c.h.b16 %v499
        %v557 = vunpack.c.l.b16 %v500
        %v558 = vunpack.c.h.b16 %v500
        %v559 = vunpack.c.l.b16 %v501
        %v560 = vunpack.c.h.b16 %v501
        %v561 = vunpack.c.l.b16 %v502
        %v562 = vunpack.c.h.b16 %v502
        %v563 = vpack.c.b16 %v533, %v531
        %v564 = vpack.c.b16 %v534, %v532
        %v565 = vpack.c.b16 %v537, %v535
        %v566 = vpack.c.b16 %v538, %v536
        %v567 = vpack.c.b16 %v541, %v539
        %v568 = vpack.c.b16 %v542, %v540
        %v569 = vpack.c.b16 %v545, %v543
        %v570 = vpack.c.b16 %v546, %v544
        %v571 = vpack.c.b16 %v549, %v547
        %v572 = vpack.c.b16 %v550, %v548
        %v573 = vpack.c.b16 %v553, %v551
        %v574 = vpack.c.b16 %v554, %v552
        %v575 = vpack.c.b16 %v557, %v555
        %v576 = vpack.c.b16 %v558, %v556
        %v577 = vpack.c.b16 %v561, %v559
        %v578 = vpack.c.b16 %v562, %v560
        %595 = vmatprep.subr.bf16.mxu0 %v578
        %596 = vmatpush1.bf16.msra.mxu0 %v577
        %597 = vmatprep.subr.bf16.mxu0 %v576
        %598 = vmatpush1.bf16.msra.mxu0 %v575
        %599 = vmatprep.subr.bf16.mxu0 %v574
        %600 = vmatpush1.bf16.msra.mxu0 %v573
        %601 = vmatprep.subr.bf16.mxu0 %v572
        %602 = vmatpush1.bf16.msra.mxu0 %v571
        %603 = vmatprep.subr.bf16.mxu0 %v570
        %604 = vmatpush1.bf16.msra.mxu0 %v569
        %605 = vmatprep.subr.bf16.mxu0 %v568
        %606 = vmatpush1.bf16.msra.mxu0 %v567
        %607 = vmatprep.subr.bf16.mxu0 %v566
        %608 = vmatpush1.bf16.msra.mxu0 %v565
        %609 = vmatprep.subr.bf16.mxu0 %v564
        %610 = vmatpush1.bf16.msra.mxu0 %v563
        %611 = vmatprep.subr.bf16.mxu0 0
        %612 = vmatpush2.bf16.msra.mxu0 0
        %613 = vmatprep.subr.bf16.mxu0 0
        %614 = vmatpush2.bf16.msra.mxu0 0
        %615 = vmatprep.subr.bf16.mxu0 0
        %616 = vmatpush2.bf16.msra.mxu0 0
        %617 = vmatprep.subr.bf16.mxu0 0
        %618 = vmatpush2.bf16.msra.mxu0 0
        %619 = vmatprep.subr.bf16.mxu0 0
        %620 = vmatpush2.bf16.msra.mxu0 0
        %621 = vmatprep.subr.bf16.mxu0 0
        %622 = vmatpush2.bf16.msra.mxu0 0
        %623 = vmatprep.subr.bf16.mxu0 0
        %624 = vmatpush2.bf16.msra.mxu0 0
        %625 = vmatprep.subr.bf16.mxu0 0
        %626 = vmatpush2.bf16.msra.mxu0 0
        %627 = vmatprep.mubr.bf16.mxu0 0
        %628 = vmatmul.mubr.bf16.gmra.mxu0 %v486
        %v629 = vpop.f32.mrf.mxu0
        %v630 = vadd.f32 %v508, %v629
        %v631 = vpop.f32.mrf.mxu0
        %v632 = vadd.f32 %v512, %v631
        %v633 = vpop.f32.mrf.mxu0
        %v634 = vpop.f32.mrf.mxu0
        %635 = vdwg.mxu0
        %v636 = vmul.f32 %v630, %v630
        %v637 = vmul.f32 %v632, %v632
        %v638 = vmul.f32 %v630, %v636
        %v639 = vmul.f32 %v632, %v637
        %v640 = vmul.f32 %v638, 0.044715
        %v641 = vmul.f32 %v639, 0.044715
        %v642 = vadd.f32 %v630, %v640
        %v643 = vadd.f32 %v632, %v641
        %v644 = vmul.f32 %v642, 0.7978846
        %v645 = vmul.f32 %v643, 0.7978846
        %v646 = vtanh.pop %v644
        %v647 = vtanh.pop %v645
        %v648 = vadd.f32 %v646, 1.0
        %v649 = vadd.f32 %v647, 1.0
        %v650 = vmul.f32 %v648, 0.5
        %v651 = vmul.f32 %v649, 0.5
        %v652 = vmul.f32 %v630, %v650
        %v653 = vmul.f32 %v632, %v651
        %v654 = vpack.c.bf16 %v652, %v652
        %v655 = vpack.c.bf16 %v653, %v653
        %v656 = vld [vmem:[%s397] sm:$0xf]
        %v657 = vld [vmem:[%s397 + $0x4] sm:$0xf]
        %v658 = vld [vmem:[%s397 + $0x8] sm:$0xf]
        %v659 = vld [vmem:[%s397 + $0xc] sm:$0xf]
        %v660 = vld [vmem:[%s397 + $0x10] sm:$0xf]
        %v661 = vld [vmem:[%s397 + $0x14] sm:$0xf]
        %v662 = vld [vmem:[%s397 + $0x18] sm:$0xf]
        %v663 = vld [vmem:[%s397 + $0x1c] sm:$0xf]
        %v664 = vld [vmem:[%s397 + $0x20] sm:$0xf]
        %v665 = vld [vmem:[%s397 + $0x24] sm:$0xf]
        %v666 = vld [vmem:[%s397 + $0x28] sm:$0xf]
        %v667 = vld [vmem:[%s397 + $0x2c] sm:$0xf]
        %v668 = vld [vmem:[%s397 + $0x30] sm:$0xf]
        %v669 = vld [vmem:[%s397 + $0x34] sm:$0xf]
        %v670 = vld [vmem:[%s397 + $0x38] sm:$0xf]
        %v671 = vld [vmem:[%s397 + $0x3c] sm:$0xf]
        %v672 = vld [vmem:[%s397 + $0x40] sm:$0xf]
        %v673 = vld [vmem:[%s397 + $0x44] sm:$0xf]
        %v674 = vld [vmem:[%s397 + $0x48] sm:$0xf]
        %v675 = vld [vmem:[%s397 + $0x4c] sm:$0xf]
        %v676 = vld [vmem:[%s397 + $0x50] sm:$0xf]
        %v677 = vld [vmem:[%s397 + $0x54] sm:$0xf]
        %v678 = vld [vmem:[%s397 + $0x58] sm:$0xf]
        %v679 = vld [vmem:[%s397 + $0x5c] sm:$0xf]
        %v680 = vld [vmem:[%s397 + $0x60] sm:$0xf]
        %v681 = vld [vmem:[%s397 + $0x64] sm:$0xf]
        %v682 = vld [vmem:[%s397 + $0x68] sm:$0xf]
        %v683 = vld [vmem:[%s397 + $0x6c] sm:$0xf]
        %v684 = vld [vmem:[%s397 + $0x70] sm:$0xf]
        %v685 = vld [vmem:[%s397 + $0x74] sm:$0xf]
        %v686 = vld [vmem:[%s397 + $0x78] sm:$0xf]
        %v687 = vld [vmem:[%s397 + $0x7c] sm:$0xf]
        %v688 = vld [vmem:[%s468] sm:$0x1]
        %v690 = vlaneseq
        %v691 = vshrl.u32 %v690, 7
        %v692 = vsub.s32 0, %v691
        %v693 = vrot.slane %v688, %v692
        %v727 = vunpack.c.l.b16 %v656
        %v728 = vunpack.c.l.b16 %v657
        %v729 = vunpack.c.l.b16 %v658
        %v730 = vunpack.c.l.b16 %v659
        %v731 = vunpack.c.l.b16 %v660
        %v732 = vunpack.c.l.b16 %v661
        %v733 = vunpack.c.l.b16 %v662
        %v734 = vunpack.c.l.b16 %v663
        %v735 = vunpack.c.l.b16 %v664
        %v736 = vunpack.c.l.b16 %v665
        %v737 = vunpack.c.l.b16 %v666
        %v738 = vunpack.c.l.b16 %v667
        %v739 = vunpack.c.l.b16 %v668
        %v740 = vunpack.c.l.b16 %v669
        %v741 = vunpack.c.l.b16 %v670
        %v742 = vunpack.c.l.b16 %v671
        %v743 = vunpack.c.l.b16 %v672
        %v744 = vunpack.c.l.b16 %v673
        %v745 = vunpack.c.l.b16 %v674
        %v746 = vunpack.c.l.b16 %v675
        %v747 = vunpack.c.l.b16 %v676
        %v748 = vunpack.c.l.b16 %v677
        %v749 = vunpack.c.l.b16 %v678
        %v750 = vunpack.c.l.b16 %v679
        %v751 = vunpack.c.l.b16 %v680
        %v752 = vunpack.c.l.b16 %v681
        %v753 = vunpack.c.l.b16 %v682
        %v754 = vunpack.c.l.b16 %v683
        %v755 = vunpack.c.l.b16 %v684
        %v756 = vunpack.c.l.b16 %v685
        %v757 = vunpack.c.l.b16 %v686
        %v758 = vunpack.c.l.b16 %v687
        %v759 = vpack.c.b16 %v728, %v727
        %v760 = vpack.c.b16 %v730, %v729
        %v761 = vpack.c.b16 %v732, %v731
        %v762 = vpack.c.b16 %v734, %v733
        %v763 = vpack.c.b16 %v736, %v735
        %v764 = vpack.c.b16 %v738, %v737
        %v765 = vpack.c.b16 %v740, %v739
        %v766 = vpack.c.b16 %v742, %v741
        %v767 = vpack.c.b16 %v744, %v743
        %v768 = vpack.c.b16 %v746, %v745
        %v769 = vpack.c.b16 %v748, %v747
        %v770 = vpack.c.b16 %v750, %v749
        %v771 = vpack.c.b16 %v752, %v751
        %v772 = vpack.c.b16 %v754, %v753
        %v773 = vpack.c.b16 %v756, %v755
        %v774 = vpack.c.b16 %v758, %v757
        %791 = vmatprep.subr.bf16.mxu0 0
        %792 = vmatpush1.bf16.msra.mxu0 %v766
        %793 = vmatprep.subr.bf16.mxu0 0
        %794 = vmatpush1.bf16.msra.mxu0 %v765
        %795 = vmatprep.subr.bf16.mxu0 0
        %796 = vmatpush1.bf16.msra.mxu0 %v764
        %797 = vmatprep.subr.bf16.mxu0 0
        %798 = vmatpush1.bf16.msra.mxu0 %v763
        %799 = vmatprep.subr.bf16.mxu0 0
        %800 = vmatpush1.bf16.msra.mxu0 %v762
        %801 = vmatprep.subr.bf16.mxu0 0
        %802 = vmatpush1.bf16.msra.mxu0 %v761
        %803 = vmatprep.subr.bf16.mxu0 0
        %804 = vmatpush1.bf16.msra.mxu0 %v760
        %805 = vmatprep.subr.bf16.mxu0 0
        %806 = vmatpush1.bf16.msra.mxu0 %v759
        %807 = vmatprep.subr.bf16.mxu0 0
        %808 = vmatpush2.bf16.msra.mxu0 %v774
        %809 = vmatprep.subr.bf16.mxu0 0
        %810 = vmatpush2.bf16.msra.mxu0 %v773
        %811 = vmatprep.subr.bf16.mxu0 0
        %812 = vmatpush2.bf16.msra.mxu0 %v772
        %813 = vmatprep.subr.bf16.mxu0 0
        %814 = vmatpush2.bf16.msra.mxu0 %v771
        %815 = vmatprep.subr.bf16.mxu0 0
        %816 = vmatpush2.bf16.msra.mxu0 %v770
        %817 = vmatprep.subr.bf16.mxu0 0
        %818 = vmatpush2.bf16.msra.mxu0 %v769
        %819 = vmatprep.subr.bf16.mxu0 0
        %820 = vmatpush2.bf16.msra.mxu0 %v768
        %821 = vmatprep.subr.bf16.mxu0 0
        %822 = vmatpush2.bf16.msra.mxu0 %v767
        %823 = vmatprep.mubr.bf16.mxu0 %v655
        %824 = vmatmul.mubr.bf16.gmra.mxu0 %v654
        %v825 = vpop.f32.mrf.mxu0
        %v826 = vadd.f32 %v693, %v825
        %v827 = vpop.f32.mrf.mxu0
        %v828 = vpop.f32.mrf.mxu0
        %v829 = vpop.f32.mrf.mxu0
        %830 = vdwg.mxu0
        %v831 = vld [vmem:[#allocation2] sm:$0xff]
        %v832 = vadd.f32 %v826, %v831
        %833 = vadd.xlane.f32.xlu0 %v832
        %v834 = vpop.xlane.xlu0 %833
        %v835 = vrcp.pop 128.0
        %v836 = vmul.f32 %v834, %v835
        %v837 = vsub.f32 %v832, %v836
        %v838 = vmul.f32 %v837, %v837
        %839 = vadd.xlane.f32.xlu0 %v838
        %v840 = vpop.xlane.xlu0 %839
        %v841 = vmul.f32 %v840, %v835
        %v842 = vadd.f32 %v841, 1e-05
        %v843 = vrsqrt.pop %v842
        %v844 = vmul.f32 %v837, %v843
        %v845 = vld [vmem:[%s471] sm:$0x1]
        %v847 = vlaneseq
        %v848 = vshrl.u32 %v847, 7
        %v849 = vsub.s32 0, %v848
        %v850 = vrot.slane %v845, %v849
        %v852 = vmul.f32 %v844, %v850
        %v853 = vld [vmem:[%s474] sm:$0x1]
        %v855 = vlaneseq
        %v856 = vshrl.u32 %v855, 7
        %v857 = vsub.s32 0, %v856
        %v858 = vrot.slane %v853, %v857
        %v860 = vadd.f32 %v852, %v858
        %861 = vst [vmem:[#allocation2] sm:$0xff] %v860
        %v862 = vpack.c.bf16 %v860, %v860
        %863 = vst [vmem:[#allocation3] sm:$0xf] %v862
        %p864 = scmp.eq.s32.totalorder %s33, 1
        // Predicated region
        $region65: #{encoder_forward.1} parent=47 // pred_check
          %p865 = pneg %p864
        $region66: #{encoder_forward.1} parent=47 // pred_check_branch
          %867 = sbr.rel (%p865) target = $region68
        $region67: #{encoder_forward.1} parent=47 // pred_region
          %868 = vst [vmem:[%s454] sm:$0xff] %v860
        $region68: #{encoder_forward.1} parent=47 // pred_fallthru
          _
        %s869 = sand.u32 %s242, 1
        %s870 = scalar_lea.sflag [#allocation7], %s869
        %s871 = sand.u32 %s242, 1
        %s872 = smul.addr %s871, 8
        %s873 = scalar_lea.vmem [#allocation11], %s872
        // Predicated region
        $region69: #{encoder_forward.1} parent=47 // pred_check
          %p874 = pneg %p252
        $region70: #{encoder_forward.1} parent=47 // pred_check_branch
          %876 = sbr.rel (%p874) target = $region72
        $region71: #{encoder_forward.1} parent=47 // pred_region
          %s878 = ssub.s32 128, 128
          %879 = vsyncadd %s870, %s878
          %s880 = smul.addr %s32, 128
          %s881 = scalar_lea.hbm %s7, %s880
          %s883 = sshll.u32 %s873, 4
          %s884 = int_to_ptr.vmem [resolvable:$true] %s883
          %886 = dma.vmem_to_hbm [thread:$0]  %s884, 128, %s881, %s870
        $region72: #{encoder_forward.1} parent=47 // pred_fallthru
          _
      $region48: #{encoder_forward.1} parent=5 // pred_fallthru
        _
      %p887 = scmp.le.s32.totalorder 2, %s22
      // Predicated region
      $region73: #{encoder_forward.1} parent=5 // pred_check
        %p888 = pneg %p887
      $region74: #{encoder_forward.1} parent=5 // pred_check_branch
        %890 = sbr.rel (%p888) target = $region76
      $region75: #{encoder_forward.1} parent=5 // pred_region
        %s891 = ssub.s32 %s22, 2
        // Predicated region
        $region77: #{encoder_forward.1} parent=75 // pred_check
          %p892 = pneg %p258
        $region78: #{encoder_forward.1} parent=75 // pred_check_branch
          %894 = sbr.rel (%p892) target = $region80
        $region79: #{encoder_forward.1} parent=75 // pred_region
          %s895 = sand.u32 %s243, 1
          %s896 = scalar_lea.sflag [#allocation7], %s895
          %s897 = sand.u32 %s243, 1
          %s898 = smul.addr %s897, 8
          %s899 = scalar_lea.vmem [#allocation11], %s898
          %900 = dma.done %s896, 128
        $region80: #{encoder_forward.1} parent=75 // pred_fallthru
          _
      $region76: #{encoder_forward.1} parent=5 // pred_fallthru
        _
    $region6: #{encoder_forward.1} parent=1 // loop_footer
      %s26 = sadd.s32 1, %s22
    $region7: #{encoder_forward.1} parent=1 // loop_footer_branch
      %21 = sbr.rel target = $region3
    $region8: #{encoder_forward.1} parent=1 // loop_exit
      _
    %901 = vsyncpa [#allocation6], 1
    %s902 = scalar_lea.sflag [#allocation6], 1
    %903 = vsyncpa %s902, 1
    %904 = vsyncpa [#allocation9], 1
    %s905 = scalar_lea.sflag [#allocation9], 1
    %906 = vsyncpa %s905, 1
    %907 = vsyncpa [#allocation7], 1
    %s908 = scalar_lea.sflag [#allocation7], 1
    %909 = vsyncpa %s908, 1

</llo_original>
